<compile_context>
chip_gen: v7x
topology: tpu7x:2x2x1
jax: 0.10.0
libtpu: 0.0.40
codegen_flags: <defaults>
</compile_context>

<pallas_src>
import functools

import jax
import jax.numpy as jnp
from jax.experimental import pallas as pl
from jax.experimental.pallas import tpu as pltpu


def _moving_avg_kernel(x_ref, *refs, kernel_size, stride, front, end, l_out,
                       fuse_res):
    # x_ref : (bc_tile, L, D)      input block (natural layout, D on lanes)
    # refs  : fused   -> (res_ref, mean_ref, xp_ref)
    #         unfused -> (mean_ref, xp_ref)
    # xp_ref: (bc_tile, Lp, D)     replicate-padded series, input dtype
    if fuse_res:
        res_ref, mean_ref, xp_ref = refs
    else:
        mean_ref, xp_ref = refs

    bc, l, d = x_ref.shape

    # 1) Replicate-padded series in VMEM (input dtype, no HBM round trip).
    #    Pad regions are written with single broadcast stores.
    xp_ref[:, front:front + l, :] = x_ref[...]
    if front > 0:
        xp_ref[:, 0:front, :] = jnp.broadcast_to(x_ref[:, 0:1, :],
                                                 (bc, front, d))
    if end > 0:
        xp_ref[:, front + l:front + l + end, :] = jnp.broadcast_to(
            x_ref[:, l - 1:l, :], (bc, end, d))

    # 2) Window sum as an SSA f32 accumulator (no scratch round trips).
    def tap(w):
        if stride == 1:
            sl = xp_ref[:, w:w + l_out, :]
        else:
            sl = xp_ref[:, pl.ds(w, l_out, stride=stride), :]
        return sl.astype(jnp.float32)

    acc = tap(0)
    for w in range(1, kernel_size):
        acc = acc + tap(w)

    mean = (acc * (1.0 / kernel_size)).astype(mean_ref.dtype)
    mean_ref[...] = mean
    if fuse_res:
        # Matches PyTorch series_decomp: res = x - moving_mean (output dtype).
        res_ref[...] = x_ref[...] - mean


def _vmem_budget():
    """Generation-aware (tile budget, vmem_limit_bytes)."""
    cap = None
    try:
        cap = getattr(pltpu.get_tpu_info(), "vmem_capacity_bytes", None)
    except Exception:
        cap = None
    if cap is None:
        cap = 64 * 1024 * 1024          # conservative (v7x-class)
    if cap <= 64 * 1024 * 1024:
        # v7x: 64 MiB physical VMEM, shared with double-buffered blocks.
        return 24 * 1024 * 1024, 32 * 1024 * 1024
    # v5e / v6e: 128 MiB physical; raise the scoped limit for larger tiles.
    return 48 * 1024 * 1024, 64 * 1024 * 1024


def _pooled_call(x, kernel_size, stride, fuse_res):
    b, c, l, d = x.shape
    front = kernel_size - 1 - (kernel_size - 1) // 2
    end = (kernel_size - 1) // 2
    lp = l + kernel_size - 1
    l_out = (lp - kernel_size) // stride + 1
    if fuse_res:
        assert stride == 1 and l_out == l, "residual fusion requires stride=1"

    bc = b * c
    x3 = x.reshape(bc, l, d)            # contiguous: free, no HBM transpose
    itemsize = x.dtype.itemsize

    # Per-bc-row VMEM: double-buffered input block, double-buffered output
    # block(s), plus the (Lp, D) padded-series scratch (single-buffered).
    out_rows = l_out + (l if fuse_res else 0)
    bytes_per_bc = d * itemsize * (2 * l + 2 * out_rows + lp)

    budget, vmem_limit = _vmem_budget()
    max_bc = max(1, budget // max(1, bytes_per_bc))

    # Aim for ~8 grid steps (>= 3-4 per v7x TensorCore) while keeping each
    # block at least ~512 KiB so per-step overhead stays amortized.
    bc_tile = pl.cdiv(bc, 8)
    min_bc = pl.cdiv(512 * 1024, max(1, l * d * itemsize))
    bc_tile = max(bc_tile, min_bc)
    bc_tile = max(1, min(bc_tile, max_bc, bc))
    grid = (pl.cdiv(bc, bc_tile),)

    kernel = functools.partial(
        _moving_avg_kernel,
        kernel_size=kernel_size, stride=stride,
        front=front, end=end, l_out=l_out, fuse_res=fuse_res,
    )

    mean_sds = jax.ShapeDtypeStruct((bc, l_out, d), x.dtype)
    mean_spec = pl.BlockSpec((bc_tile, l_out, d), lambda i: (i, 0, 0))
    if fuse_res:
        out_shape = (jax.ShapeDtypeStruct((bc, l, d), x.dtype), mean_sds)
        out_specs = (pl.BlockSpec((bc_tile, l, d), lambda i: (i, 0, 0)),
                     mean_spec)
    else:
        out_shape = mean_sds
        out_specs = mean_spec

    outs = pl.pallas_call(
        kernel,
        out_shape=out_shape,
        grid_spec=pltpu.PrefetchScalarGridSpec(
            num_scalar_prefetch=0,
            grid=grid,
            in_specs=[pl.BlockSpec((bc_tile, l, d), lambda i: (i, 0, 0))],
            out_specs=out_specs,
            scratch_shapes=[
                pltpu.VMEM((bc_tile, lp, d), x.dtype),   # padded series
            ],
        ),
        compiler_params=pltpu.CompilerParams(
            dimension_semantics=("parallel",),
            vmem_limit_bytes=vmem_limit,
        ),
    )(x3)

    if fuse_res:
        res3, mean3 = outs
        return res3.reshape(b, c, l, d), mean3.reshape(b, c, l_out, d)
    return outs.reshape(b, c, l_out, d)


def moving_avg_2d(x, kernel_size, stride=1):
    """Equivalent to PyTorch moving_avg_2d.forward(x) for x of shape (B,C,L,D)."""
    return _pooled_call(x, kernel_size, stride, fuse_res=False)


def series_decomp(x, kernel_size=13):
    """Equivalent to PyTorch series_decomp.forward(x): returns (res, moving_mean)."""
    return _pooled_call(x, kernel_size, 1, fuse_res=True)


def _reference(x, kernel_size, stride):
    """Pure-JAX reference reproducing the PyTorch semantics."""
    front_rep = kernel_size - 1 - (kernel_size - 1) // 2
    end_rep = (kernel_size - 1) // 2
    front = jnp.repeat(x[:, :, 0:1, :], front_rep, axis=2)
    end = jnp.repeat(x[:, :, -1:, :], end_rep, axis=2)
    xp = jnp.concatenate([front, x, end], axis=2)
    lp = xp.shape[2]
    l_out = (lp - kernel_size) // stride + 1
    return jnp.stack(
        [
            xp[:, :, t * stride:t * stride + kernel_size, :].mean(axis=2)
            for t in range(l_out)
        ],
        axis=2,
    )


if __name__ == "__main__":
    # Small shapes consistent with the module: (B, C, L, D) where
    # C = d_model, L = length // period, D = period.
    B, C, L, D = 2, 4, 16, 32
    key = jax.random.PRNGKey(0)
    x = jax.random.normal(key, (B, C, L, D), dtype=jnp.float32)

    # series_decomp with decomp_kernel=13 as used inside TemporalCorrelation1
    # (fused residual + moving mean).
    res, mean = jax.block_until_ready(series_decomp(x, 13))
    ref_mean = _reference(x, 13, 1)
    assert mean.shape == ref_mean.shape, (mean.shape, ref_mean.shape)
    assert jnp.allclose(mean, ref_mean, atol=1e-5, rtol=1e-5), \
        "moving_mean mismatch vs reference (kernel_size=13)"
    assert jnp.allclose(res, x - ref_mean, atol=1e-5, rtol=1e-5), \
        "residual mismatch vs reference (kernel_size=13)"

    # Even kernel (asymmetric pad split), mean-only path.
    out = jax.block_until_ready(moving_avg_2d(x, 4, 1))
    ref = _reference(x, 4, 1)
    assert out.shape == ref.shape, (out.shape, ref.shape)
    assert jnp.allclose(out, ref, atol=1e-5, rtol=1e-5), \
        "moving_avg mismatch vs reference (kernel_size=4)"

    print("KERNEL_OK")
</pallas_src>

<mosaic_0001>
module attributes {stable_mosaic.version = 11 : i64} {
  func.func @_moving_avg_kernel(%arg0: i32, %arg1: memref<8x16x32xf32, #tpu.memory_space<vmem>>, %arg2: memref<8x16x32xf32, #tpu.memory_space<vmem>>, %arg3: memref<8x16x32xf32, #tpu.memory_space<vmem>>, %arg4: memref<8x28x32xf32, #tpu.memory_space<vmem>>) attributes {dimension_semantics = [#tpu.dimension_semantics<parallel>], iteration_bounds = array<i64: 1>, scalar_prefetch = 0 : i64, scratch_operands = 1 : i64, tpu.core_type = #tpu.core_type<tc>, window_params = [{transform_indices = @transform_0, window_bounds = array<i64: 8, 16, 32>}, {transform_indices = @transform_1, window_bounds = array<i64: 8, 16, 32>}, {transform_indices = @transform_2, window_bounds = array<i64: 8, 16, 32>}]} {
    %c0 = arith.constant 0 : index
    %c0_0 = arith.constant 0 : index
    %c0_1 = arith.constant 0 : index
    %0 = vector.load %arg1[%c0, %c0_0, %c0_1] : memref<8x16x32xf32, #tpu.memory_space<vmem>>, vector<8x16x32xf32>
    %c0_2 = arith.constant 0 : index
    %c6 = arith.constant 6 : index
    %c0_3 = arith.constant 0 : index
    %1 = vector.load %arg4[%c0_2, %c6, %c0_3] : memref<8x28x32xf32, #tpu.memory_space<vmem>>, vector<8x16x32xf32>
    tpu.vector_store %arg4[%c0_2, %c6, %c0_3], %0 {strides = array<i32>} : memref<8x28x32xf32, #tpu.memory_space<vmem>>, vector<8x16x32xf32>,
    %c0_4 = arith.constant 0 : index
    %c0_5 = arith.constant 0 : index
    %c0_6 = arith.constant 0 : index
    %2 = vector.load %arg1[%c0_4, %c0_5, %c0_6] : memref<8x16x32xf32, #tpu.memory_space<vmem>>, vector<8x1x32xf32>
    %3 = vector.shape_cast %2 : vector<8x1x32xf32> to vector<8x1x32xf32>
    %4 = vector.broadcast %3 : vector<8x1x32xf32> to vector<8x6x32xf32>
    %c0_7 = arith.constant 0 : index
    %c0_8 = arith.constant 0 : index
    %c0_9 = arith.constant 0 : index
    %5 = vector.load %arg4[%c0_7, %c0_8, %c0_9] : memref<8x28x32xf32, #tpu.memory_space<vmem>>, vector<8x6x32xf32>
    tpu.vector_store %arg4[%c0_7, %c0_8, %c0_9], %4 {strides = array<i32>} : memref<8x28x32xf32, #tpu.memory_space<vmem>>, vector<8x6x32xf32>,
    %c0_10 = arith.constant 0 : index
    %c15 = arith.constant 15 : index
    %c0_11 = arith.constant 0 : index
    %6 = vector.load %arg1[%c0_10, %c15, %c0_11] : memref<8x16x32xf32, #tpu.memory_space<vmem>>, vector<8x1x32xf32>
    %7 = vector.shape_cast %6 : vector<8x1x32xf32> to vector<8x1x32xf32>
    %8 = vector.broadcast %7 : vector<8x1x32xf32> to vector<8x6x32xf32>
    %c0_12 = arith.constant 0 : index
    %c22 = arith.constant 22 : index
    %c0_13 = arith.constant 0 : index
    %9 = vector.load %arg4[%c0_12, %c22, %c0_13] : memref<8x28x32xf32, #tpu.memory_space<vmem>>, vector<8x6x32xf32>
    tpu.vector_store %arg4[%c0_12, %c22, %c0_13], %8 {strides = array<i32>} : memref<8x28x32xf32, #tpu.memory_space<vmem>>, vector<8x6x32xf32>,
    %c0_14 = arith.constant 0 : index
    %c0_15 = arith.constant 0 : index
    %c0_16 = arith.constant 0 : index
    %10 = vector.load %arg4[%c0_14, %c0_15, %c0_16] : memref<8x28x32xf32, #tpu.memory_space<vmem>>, vector<8x16x32xf32>
    %c0_17 = arith.constant 0 : index
    %c1 = arith.constant 1 : index
    %c0_18 = arith.constant 0 : index
    %11 = vector.load %arg4[%c0_17, %c1, %c0_18] : memref<8x28x32xf32, #tpu.memory_space<vmem>>, vector<8x16x32xf32>
    %12 = arith.addf %10, %11 : vector<8x16x32xf32>
    %c0_19 = arith.constant 0 : index
    %c2 = arith.constant 2 : index
    %c0_20 = arith.constant 0 : index
    %13 = vector.load %arg4[%c0_19, %c2, %c0_20] : memref<8x28x32xf32, #tpu.memory_space<vmem>>, vector<8x16x32xf32>
    %14 = arith.addf %12, %13 : vector<8x16x32xf32>
    %c0_21 = arith.constant 0 : index
    %c3 = arith.constant 3 : index
    %c0_22 = arith.constant 0 : index
    %15 = vector.load %arg4[%c0_21, %c3, %c0_22] : memref<8x28x32xf32, #tpu.memory_space<vmem>>, vector<8x16x32xf32>
    %16 = arith.addf %14, %15 : vector<8x16x32xf32>
    %c0_23 = arith.constant 0 : index
    %c4 = arith.constant 4 : index
    %c0_24 = arith.constant 0 : index
    %17 = vector.load %arg4[%c0_23, %c4, %c0_24] : memref<8x28x32xf32, #tpu.memory_space<vmem>>, vector<8x16x32xf32>
    %18 = arith.addf %16, %17 : vector<8x16x32xf32>
    %c0_25 = arith.constant 0 : index
    %c5 = arith.constant 5 : index
    %c0_26 = arith.constant 0 : index
    %19 = vector.load %arg4[%c0_25, %c5, %c0_26] : memref<8x28x32xf32, #tpu.memory_space<vmem>>, vector<8x16x32xf32>
    %20 = arith.addf %18, %19 : vector<8x16x32xf32>
    %c0_27 = arith.constant 0 : index
    %c6_28 = arith.constant 6 : index
    %c0_29 = arith.constant 0 : index
    %21 = vector.load %arg4[%c0_27, %c6_28, %c0_29] : memref<8x28x32xf32, #tpu.memory_space<vmem>>, vector<8x16x32xf32>
    %22 = arith.addf %20, %21 : vector<8x16x32xf32>
    %c0_30 = arith.constant 0 : index
    %c7 = arith.constant 7 : index
    %c0_31 = arith.constant 0 : index
    %23 = vector.load %arg4[%c0_30, %c7, %c0_31] : memref<8x28x32xf32, #tpu.memory_space<vmem>>, vector<8x16x32xf32>
    %24 = arith.addf %22, %23 : vector<8x16x32xf32>
    %c0_32 = arith.constant 0 : index
    %c8 = arith.constant 8 : index
    %c0_33 = arith.constant 0 : index
    %25 = vector.load %arg4[%c0_32, %c8, %c0_33] : memref<8x28x32xf32, #tpu.memory_space<vmem>>, vector<8x16x32xf32>
    %26 = arith.addf %24, %25 : vector<8x16x32xf32>
    %c0_34 = arith.constant 0 : index
    %c9 = arith.constant 9 : index
    %c0_35 = arith.constant 0 : index
    %27 = vector.load %arg4[%c0_34, %c9, %c0_35] : memref<8x28x32xf32, #tpu.memory_space<vmem>>, vector<8x16x32xf32>
    %28 = arith.addf %26, %27 : vector<8x16x32xf32>
    %c0_36 = arith.constant 0 : index
    %c10 = arith.constant 10 : index
    %c0_37 = arith.constant 0 : index
    %29 = vector.load %arg4[%c0_36, %c10, %c0_37] : memref<8x28x32xf32, #tpu.memory_space<vmem>>, vector<8x16x32xf32>
    %30 = arith.addf %28, %29 : vector<8x16x32xf32>
    %c0_38 = arith.constant 0 : index
    %c11 = arith.constant 11 : index
    %c0_39 = arith.constant 0 : index
    %31 = vector.load %arg4[%c0_38, %c11, %c0_39] : memref<8x28x32xf32, #tpu.memory_space<vmem>>, vector<8x16x32xf32>
    %32 = arith.addf %30, %31 : vector<8x16x32xf32>
    %c0_40 = arith.constant 0 : index
    %c12 = arith.constant 12 : index
    %c0_41 = arith.constant 0 : index
    %33 = vector.load %arg4[%c0_40, %c12, %c0_41] : memref<8x28x32xf32, #tpu.memory_space<vmem>>, vector<8x16x32xf32>
    %34 = arith.addf %32, %33 : vector<8x16x32xf32>
    %cst = arith.constant 0.0769230798 : f32
    %35 = vector.broadcast %cst : f32 to vector<8x16x32xf32>
    %36 = arith.mulf %34, %35 : vector<8x16x32xf32>
    %c0_42 = arith.constant 0 : index
    %c0_43 = arith.constant 0 : index
    %c0_44 = arith.constant 0 : index
    %37 = vector.load %arg3[%c0_42, %c0_43, %c0_44] : memref<8x16x32xf32, #tpu.memory_space<vmem>>, vector<8x16x32xf32>
    tpu.vector_store %arg3[%c0_42, %c0_43, %c0_44], %36 {strides = array<i32>} : memref<8x16x32xf32, #tpu.memory_space<vmem>>, vector<8x16x32xf32>,
    %c0_45 = arith.constant 0 : index
    %c0_46 = arith.constant 0 : index
    %c0_47 = arith.constant 0 : index
    %38 = vector.load %arg1[%c0_45, %c0_46, %c0_47] : memref<8x16x32xf32, #tpu.memory_space<vmem>>, vector<8x16x32xf32>
    %39 = arith.subf %38, %36 : vector<8x16x32xf32>
    %c0_48 = arith.constant 0 : index
    %c0_49 = arith.constant 0 : index
    %c0_50 = arith.constant 0 : index
    %40 = vector.load %arg2[%c0_48, %c0_49, %c0_50] : memref<8x16x32xf32, #tpu.memory_space<vmem>>, vector<8x16x32xf32>
    tpu.vector_store %arg2[%c0_48, %c0_49, %c0_50], %39 {strides = array<i32>} : memref<8x16x32xf32, #tpu.memory_space<vmem>>, vector<8x16x32xf32>,
    return
  }
  func.func @transform_0(%arg0: i32) -> (i32, i32, i32) {
    %c0_i32 = arith.constant 0 : i32
    %c0_i32_0 = arith.constant 0 : i32
    %c0_i32_1 = arith.constant 0 : i32
    return %arg0, %c0_i32, %c0_i32_0 : i32, i32, i32
  }
  func.func @transform_1(%arg0: i32) -> (i32, i32, i32) {
    %c0_i32 = arith.constant 0 : i32
    %c0_i32_0 = arith.constant 0 : i32
    %c0_i32_1 = arith.constant 0 : i32
    return %arg0, %c0_i32, %c0_i32_0 : i32, i32, i32
  }
  func.func @transform_2(%arg0: i32) -> (i32, i32, i32) {
    %c0_i32 = arith.constant 0 : i32
    %c0_i32_0 = arith.constant 0 : i32
    %c0_i32_1 = arith.constant 0 : i32
    return %arg0, %c0_i32, %c0_i32_0 : i32, i32, i32
  }
}

</mosaic_0001>

<llo_original>
// kernel: tpu_custom_call.1
$region0: #{tpu_custom_call.1}
  #allocation0 [shape = 'u32[]', space=smem, size = 0x4, offset = 0x4, fixed_abs, tag = 'smem constant byte address 0x4 - core index']
  #allocation1 [shape = 'u32[144,128]{1,0:T(1,128)}', space=vmem, size = 0x12000, scoped, tag = 'internal scratch']
  #allocation2 [shape = 'f32[8,28,32]{2,1,0:T(8,128)}', space=vmem, size = 0x20000, scoped, tag = 'scratch operand']
  %s0 = inlined_call_operand.hbm [shape: f32[8,16,32], index: 0, kind: input, shape index: {}]
  %s1 = inlined_call_operand.hbm [shape: f32[8,16,32], index: 1, kind: output, shape index: {0}]
  %s2 = inlined_call_operand.hbm [shape: f32[8,16,32], index: 2, kind: output, shape index: {1}]
  %3 = xla_tuple %s1, %s2
  %s4 = sld [smem:[#allocation0]]
  $region26: #{tpu_custom_call.1} parent=0
    _
  %s6 = ssub.s32 1, %s4
  %s7 = scalar_select 0, %s6, %s4
  $region1: #{tpu_custom_call.1} parent=0
    #allocation3 [shape = 'u8[65536]{0}', space=vmem, size = 0x10000, scoped, tag = 'input window, operand 0, single buffered']
    #allocation4 [shape = 's32[1]{0}', space=sflag, size = 0x4, scoped, tag = 'scoped memory for tpu_custom_call.1']
    #allocation5 [shape = 's32[1]{0}', space=sflag, size = 0x4, scoped, tag = 'scoped memory for tpu_custom_call.1']
    #allocation6 [shape = 'u8[65536]{0}', space=vmem, size = 0x10000, scoped, tag = 'output window, operand 0, single buffered']
    #allocation7 [shape = 'u8[65536]{0}', space=vmem, size = 0x10000, scoped, tag = 'output window, operand 1, single buffered']
    #allocation8 [shape = 's32[1]{0}', space=sflag, size = 0x4, scoped, tag = 'scoped memory for tpu_custom_call.1']
    %8 = vsyncpa [#allocation4], 0
    %9 = vsyncpa [#allocation5], 0
    %10 = vsyncpa [#allocation8], 0
    // Predicated region
    $region2: #{tpu_custom_call.1} parent=1 // pred_check
      _
    $region3: #{tpu_custom_call.1} parent=1 // pred_check_branch
      %12 = sbr.rel (0) target = $region5
    $region4: #{tpu_custom_call.1} parent=1 // pred_region
      %s14 = ssub.s32 2048, 2048
      %15 = vsyncadd [#allocation4], %s14
      %s16 = sshll.u32 [#allocation3], 4
      %s17 = int_to_ptr.vmem [resolvable:$true] %s16
      %22 = dma.hbm_to_vmem [thread:$0]  %s0, 2048, %s17, [#allocation4], 128, 128, 8
    $region5: #{tpu_custom_call.1} parent=1 // pred_fallthru
      _
    // Predicated region
    $region6: #{tpu_custom_call.1} parent=1 // pred_check
      _
    $region7: #{tpu_custom_call.1} parent=1 // pred_check_branch
      %24 = sbr.rel (0) target = $region9
    $region8: #{tpu_custom_call.1} parent=1 // pred_region
      %25 = dma.done [#allocation4], 2048
    $region9: #{tpu_custom_call.1} parent=1 // pred_fallthru
      _
    %v26 = vld [vmem:[#allocation3] sm:$0xff]
    %v27 = vld [vmem:[#allocation3 + $0x8] sm:$0xff]
    %v28 = vld [vmem:[#allocation3 + $0x10] sm:$0xff]
    %v29 = vld [vmem:[#allocation3 + $0x18] sm:$0xff]
    %v30 = vld [vmem:[#allocation3 + $0x20] sm:$0xff]
    %v31 = vld [vmem:[#allocation3 + $0x28] sm:$0xff]
    %v32 = vld [vmem:[#allocation3 + $0x30] sm:$0xff]
    %v33 = vld [vmem:[#allocation3 + $0x38] sm:$0xff]
    %v34 = vld [vmem:[#allocation3 + $0x40] sm:$0xff]
    %v35 = vld [vmem:[#allocation3 + $0x48] sm:$0xff]
    %v36 = vld [vmem:[#allocation3 + $0x50] sm:$0xff]
    %v37 = vld [vmem:[#allocation3 + $0x58] sm:$0xff]
    %v38 = vld [vmem:[#allocation3 + $0x60] sm:$0xff]
    %v39 = vld [vmem:[#allocation3 + $0x68] sm:$0xff]
    %v40 = vld [vmem:[#allocation3 + $0x70] sm:$0xff]
    %v41 = vld [vmem:[#allocation3 + $0x78] sm:$0xff]
    %vm42 = vcmask 261120
    %43 = vst.msk [vmem:[#allocation2 + $0x6] sm:$0xff] %vm42, %v26
    %44 = vst.msk [vmem:[#allocation2 + $0xe] sm:$0xff] %vm42, %v27
    %45 = vst.msk [vmem:[#allocation2 + $0x26] sm:$0xff] %vm42, %v28
    %46 = vst.msk [vmem:[#allocation2 + $0x2e] sm:$0xff] %vm42, %v29
    %47 = vst.msk [vmem:[#allocation2 + $0x46] sm:$0xff] %vm42, %v30
    %48 = vst.msk [vmem:[#allocation2 + $0x4e] sm:$0xff] %vm42, %v31
    %49 = vst.msk [vmem:[#allocation2 + $0x66] sm:$0xff] %vm42, %v32
    %50 = vst.msk [vmem:[#allocation2 + $0x6e] sm:$0xff] %vm42, %v33
    %51 = vst.msk [vmem:[#allocation2 + $0x86] sm:$0xff] %vm42, %v34
    %52 = vst.msk [vmem:[#allocation2 + $0x8e] sm:$0xff] %vm42, %v35
    %53 = vst.msk [vmem:[#allocation2 + $0xa6] sm:$0xff] %vm42, %v36
    %54 = vst.msk [vmem:[#allocation2 + $0xae] sm:$0xff] %vm42, %v37
    %55 = vst.msk [vmem:[#allocation2 + $0xc6] sm:$0xff] %vm42, %v38
    %56 = vst.msk [vmem:[#allocation2 + $0xce] sm:$0xff] %vm42, %v39
    %57 = vst.msk [vmem:[#allocation2 + $0xe6] sm:$0xff] %vm42, %v40
    %58 = vst.msk [vmem:[#allocation2 + $0xee] sm:$0xff] %vm42, %v41
    %v59 = vld [vmem:[#allocation3] sm:$0x1]
    %v60 = vld [vmem:[#allocation3 + $0x10] sm:$0x1]
    %v61 = vld [vmem:[#allocation3 + $0x20] sm:$0x1]
    %v62 = vld [vmem:[#allocation3 + $0x30] sm:$0x1]
    %v63 = vld [vmem:[#allocation3 + $0x40] sm:$0x1]
    %v64 = vld [vmem:[#allocation3 + $0x50] sm:$0x1]
    %v65 = vld [vmem:[#allocation3 + $0x60] sm:$0x1]
    %v66 = vld [vmem:[#allocation3 + $0x70] sm:$0x1]
    %v67 = vlaneseq
    %v68 = vshrl.u32 %v67, 7
    %v69 = vsub.s32 0, %v68
    %v70 = vrot.slane %v59, %v69
    %v71 = vlaneseq
    %v72 = vshrl.u32 %v71, 7
    %v73 = vsub.s32 0, %v72
    %v74 = vrot.slane %v60, %v73
    %v75 = vlaneseq
    %v76 = vshrl.u32 %v75, 7
    %v77 = vsub.s32 0, %v76
    %v78 = vrot.slane %v61, %v77
    %v79 = vlaneseq
    %v80 = vshrl.u32 %v79, 7
    %v81 = vsub.s32 0, %v80
    %v82 = vrot.slane %v62, %v81
    %v83 = vlaneseq
    %v84 = vshrl.u32 %v83, 7
    %v85 = vsub.s32 0, %v84
    %v86 = vrot.slane %v63, %v85
    %v87 = vlaneseq
    %v88 = vshrl.u32 %v87, 7
    %v89 = vsub.s32 0, %v88
    %v90 = vrot.slane %v64, %v89
    %v91 = vlaneseq
    %v92 = vshrl.u32 %v91, 7
    %v93 = vsub.s32 0, %v92
    %v94 = vrot.slane %v65, %v93
    %v95 = vlaneseq
    %v96 = vshrl.u32 %v95, 7
    %v97 = vsub.s32 0, %v96
    %v98 = vrot.slane %v66, %v97
    %vm99 = vcmask 259072
    %100 = vst.msk [vmem:[#allocation2] sm:$0x3f] %vm99, %v70
    %101 = vst.msk [vmem:[#allocation2 + $0x20] sm:$0x3f] %vm99, %v74
    %102 = vst.msk [vmem:[#allocation2 + $0x40] sm:$0x3f] %vm99, %v78
    %103 = vst.msk [vmem:[#allocation2 + $0x60] sm:$0x3f] %vm99, %v82
    %104 = vst.msk [vmem:[#allocation2 + $0x80] sm:$0x3f] %vm99, %v86
    %105 = vst.msk [vmem:[#allocation2 + $0xa0] sm:$0x3f] %vm99, %v90
    %106 = vst.msk [vmem:[#allocation2 + $0xc0] sm:$0x3f] %vm99, %v94
    %107 = vst.msk [vmem:[#allocation2 + $0xe0] sm:$0x3f] %vm99, %v98
    %v108 = vld [vmem:[#allocation3 + $0xf] sm:$0x1]
    %v109 = vld [vmem:[#allocation3 + $0x1f] sm:$0x1]
    %v110 = vld [vmem:[#allocation3 + $0x2f] sm:$0x1]
    %v111 = vld [vmem:[#allocation3 + $0x3f] sm:$0x1]
    %v112 = vld [vmem:[#allocation3 + $0x4f] sm:$0x1]
    %v113 = vld [vmem:[#allocation3 + $0x5f] sm:$0x1]
    %v114 = vld [vmem:[#allocation3 + $0x6f] sm:$0x1]
    %v115 = vld [vmem:[#allocation3 + $0x7f] sm:$0x1]
    %v116 = vlaneseq
    %v117 = vshrl.u32 %v116, 7
    %v118 = vsub.s32 0, %v117
    %v119 = vrot.slane %v108, %v118
    %v120 = vlaneseq
    %v121 = vshrl.u32 %v120, 7
    %v122 = vsub.s32 0, %v121
    %v123 = vrot.slane %v109, %v122
    %v124 = vlaneseq
    %v125 = vshrl.u32 %v124, 7
    %v126 = vsub.s32 0, %v125
    %v127 = vrot.slane %v110, %v126
    %v128 = vlaneseq
    %v129 = vshrl.u32 %v128, 7
    %v130 = vsub.s32 0, %v129
    %v131 = vrot.slane %v111, %v130
    %v132 = vlaneseq
    %v133 = vshrl.u32 %v132, 7
    %v134 = vsub.s32 0, %v133
    %v135 = vrot.slane %v112, %v134
    %v136 = vlaneseq
    %v137 = vshrl.u32 %v136, 7
    %v138 = vsub.s32 0, %v137
    %v139 = vrot.slane %v113, %v138
    %v140 = vlaneseq
    %v141 = vshrl.u32 %v140, 7
    %v142 = vsub.s32 0, %v141
    %v143 = vrot.slane %v114, %v142
    %v144 = vlaneseq
    %v145 = vshrl.u32 %v144, 7
    %v146 = vsub.s32 0, %v145
    %v147 = vrot.slane %v115, %v146
    %148 = vst.msk [vmem:[#allocation2 + $0x16] sm:$0x3f] %vm99, %v119
    %149 = vst.msk [vmem:[#allocation2 + $0x36] sm:$0x3f] %vm99, %v123
    %150 = vst.msk [vmem:[#allocation2 + $0x56] sm:$0x3f] %vm99, %v127
    %151 = vst.msk [vmem:[#allocation2 + $0x76] sm:$0x3f] %vm99, %v131
    %152 = vst.msk [vmem:[#allocation2 + $0x96] sm:$0x3f] %vm99, %v135
    %153 = vst.msk [vmem:[#allocation2 + $0xb6] sm:$0x3f] %vm99, %v139
    %154 = vst.msk [vmem:[#allocation2 + $0xd6] sm:$0x3f] %vm99, %v143
    %155 = vst.msk [vmem:[#allocation2 + $0xf6] sm:$0x3f] %vm99, %v147
    %v156 = vld [vmem:[#allocation2] sm:$0xff]
    %v157 = vld [vmem:[#allocation2 + $0x8] sm:$0xff]
    %v158 = vld [vmem:[#allocation2 + $0x20] sm:$0xff]
    %v159 = vld [vmem:[#allocation2 + $0x28] sm:$0xff]
    %v160 = vld [vmem:[#allocation2 + $0x40] sm:$0xff]
    %v161 = vld [vmem:[#allocation2 + $0x48] sm:$0xff]
    %v162 = vld [vmem:[#allocation2 + $0x60] sm:$0xff]
    %v163 = vld [vmem:[#allocation2 + $0x68] sm:$0xff]
    %v164 = vld [vmem:[#allocation2 + $0x80] sm:$0xff]
    %v165 = vld [vmem:[#allocation2 + $0x88] sm:$0xff]
    %v166 = vld [vmem:[#allocation2 + $0xa0] sm:$0xff]
    %v167 = vld [vmem:[#allocation2 + $0xa8] sm:$0xff]
    %v168 = vld [vmem:[#allocation2 + $0xc0] sm:$0xff]
    %v169 = vld [vmem:[#allocation2 + $0xc8] sm:$0xff]
    %v170 = vld [vmem:[#allocation2 + $0xe0] sm:$0xff]
    %v171 = vld [vmem:[#allocation2 + $0xe8] sm:$0xff]
    %v172 = vld [vmem:[#allocation2 + $0x1] sm:$0xff]
    %v173 = vld [vmem:[#allocation2 + $0x9] sm:$0xff]
    %v174 = vld [vmem:[#allocation2 + $0x21] sm:$0xff]
    %v175 = vld [vmem:[#allocation2 + $0x29] sm:$0xff]
    %v176 = vld [vmem:[#allocation2 + $0x41] sm:$0xff]
    %v177 = vld [vmem:[#allocation2 + $0x49] sm:$0xff]
    %v178 = vld [vmem:[#allocation2 + $0x61] sm:$0xff]
    %v179 = vld [vmem:[#allocation2 + $0x69] sm:$0xff]
    %v180 = vld [vmem:[#allocation2 + $0x81] sm:$0xff]
    %v181 = vld [vmem:[#allocation2 + $0x89] sm:$0xff]
    %v182 = vld [vmem:[#allocation2 + $0xa1] sm:$0xff]
    %v183 = vld [vmem:[#allocation2 + $0xa9] sm:$0xff]
    %v184 = vld [vmem:[#allocation2 + $0xc1] sm:$0xff]
    %v185 = vld [vmem:[#allocation2 + $0xc9] sm:$0xff]
    %v186 = vld [vmem:[#allocation2 + $0xe1] sm:$0xff]
    %v187 = vld [vmem:[#allocation2 + $0xe9] sm:$0xff]
    %v188 = vadd.f32 %v156, %v172
    %v189 = vadd.f32 %v157, %v173
    %v190 = vadd.f32 %v158, %v174
    %v191 = vadd.f32 %v159, %v175
    %v192 = vadd.f32 %v160, %v176
    %v193 = vadd.f32 %v161, %v177
    %v194 = vadd.f32 %v162, %v178
    %v195 = vadd.f32 %v163, %v179
    %v196 = vadd.f32 %v164, %v180
    %v197 = vadd.f32 %v165, %v181
    %v198 = vadd.f32 %v166, %v182
    %v199 = vadd.f32 %v167, %v183
    %v200 = vadd.f32 %v168, %v184
    %v201 = vadd.f32 %v169, %v185
    %v202 = vadd.f32 %v170, %v186
    %v203 = vadd.f32 %v171, %v187
    %v204 = vld [vmem:[#allocation2 + $0x2] sm:$0xff]
    %v205 = vld [vmem:[#allocation2 + $0xa] sm:$0xff]
    %v206 = vld [vmem:[#allocation2 + $0x22] sm:$0xff]
    %v207 = vld [vmem:[#allocation2 + $0x2a] sm:$0xff]
    %v208 = vld [vmem:[#allocation2 + $0x42] sm:$0xff]
    %v209 = vld [vmem:[#allocation2 + $0x4a] sm:$0xff]
    %v210 = vld [vmem:[#allocation2 + $0x62] sm:$0xff]
    %v211 = vld [vmem:[#allocation2 + $0x6a] sm:$0xff]
    %v212 = vld [vmem:[#allocation2 + $0x82] sm:$0xff]
    %v213 = vld [vmem:[#allocation2 + $0x8a] sm:$0xff]
    %v214 = vld [vmem:[#allocation2 + $0xa2] sm:$0xff]
    %v215 = vld [vmem:[#allocation2 + $0xaa] sm:$0xff]
    %v216 = vld [vmem:[#allocation2 + $0xc2] sm:$0xff]
    %v217 = vld [vmem:[#allocation2 + $0xca] sm:$0xff]
    %v218 = vld [vmem:[#allocation2 + $0xe2] sm:$0xff]
    %v219 = vld [vmem:[#allocation2 + $0xea] sm:$0xff]
    %v220 = vadd.f32 %v188, %v204
    %v221 = vadd.f32 %v189, %v205
    %v222 = vadd.f32 %v190, %v206
    %v223 = vadd.f32 %v191, %v207
    %v224 = vadd.f32 %v192, %v208
    %v225 = vadd.f32 %v193, %v209
    %v226 = vadd.f32 %v194, %v210
    %v227 = vadd.f32 %v195, %v211
    %v228 = vadd.f32 %v196, %v212
    %v229 = vadd.f32 %v197, %v213
    %v230 = vadd.f32 %v198, %v214
    %v231 = vadd.f32 %v199, %v215
    %v232 = vadd.f32 %v200, %v216
    %v233 = vadd.f32 %v201, %v217
    %v234 = vadd.f32 %v202, %v218
    %v235 = vadd.f32 %v203, %v219
    %v236 = vld [vmem:[#allocation2 + $0x3] sm:$0xff]
    %v237 = vld [vmem:[#allocation2 + $0xb] sm:$0xff]
    %v238 = vld [vmem:[#allocation2 + $0x23] sm:$0xff]
    %v239 = vld [vmem:[#allocation2 + $0x2b] sm:$0xff]
    %v240 = vld [vmem:[#allocation2 + $0x43] sm:$0xff]
    %v241 = vld [vmem:[#allocation2 + $0x4b] sm:$0xff]
    %v242 = vld [vmem:[#allocation2 + $0x63] sm:$0xff]
    %v243 = vld [vmem:[#allocation2 + $0x6b] sm:$0xff]
    %v244 = vld [vmem:[#allocation2 + $0x83] sm:$0xff]
    %v245 = vld [vmem:[#allocation2 + $0x8b] sm:$0xff]
    %v246 = vld [vmem:[#allocation2 + $0xa3] sm:$0xff]
    %v247 = vld [vmem:[#allocation2 + $0xab] sm:$0xff]
    %v248 = vld [vmem:[#allocation2 + $0xc3] sm:$0xff]
    %v249 = vld [vmem:[#allocation2 + $0xcb] sm:$0xff]
    %v250 = vld [vmem:[#allocation2 + $0xe3] sm:$0xff]
    %v251 = vld [vmem:[#allocation2 + $0xeb] sm:$0xff]
    %v252 = vadd.f32 %v220, %v236
    %v253 = vadd.f32 %v221, %v237
    %v254 = vadd.f32 %v222, %v238
    %v255 = vadd.f32 %v223, %v239
    %v256 = vadd.f32 %v224, %v240
    %v257 = vadd.f32 %v225, %v241
    %v258 = vadd.f32 %v226, %v242
    %v259 = vadd.f32 %v227, %v243
    %v260 = vadd.f32 %v228, %v244
    %v261 = vadd.f32 %v229, %v245
    %v262 = vadd.f32 %v230, %v246
    %v263 = vadd.f32 %v231, %v247
    %v264 = vadd.f32 %v232, %v248
    %v265 = vadd.f32 %v233, %v249
    %v266 = vadd.f32 %v234, %v250
    %v267 = vadd.f32 %v235, %v251
    %v268 = vld [vmem:[#allocation2 + $0x4] sm:$0xff]
    %v269 = vld [vmem:[#allocation2 + $0xc] sm:$0xff]
    %v270 = vld [vmem:[#allocation2 + $0x24] sm:$0xff]
    %v271 = vld [vmem:[#allocation2 + $0x2c] sm:$0xff]
    %v272 = vld [vmem:[#allocation2 + $0x44] sm:$0xff]
    %v273 = vld [vmem:[#allocation2 + $0x4c] sm:$0xff]
    %v274 = vld [vmem:[#allocation2 + $0x64] sm:$0xff]
    %v275 = vld [vmem:[#allocation2 + $0x6c] sm:$0xff]
    %v276 = vld [vmem:[#allocation2 + $0x84] sm:$0xff]
    %v277 = vld [vmem:[#allocation2 + $0x8c] sm:$0xff]
    %v278 = vld [vmem:[#allocation2 + $0xa4] sm:$0xff]
    %v279 = vld [vmem:[#allocation2 + $0xac] sm:$0xff]
    %v280 = vld [vmem:[#allocation2 + $0xc4] sm:$0xff]
    %v281 = vld [vmem:[#allocation2 + $0xcc] sm:$0xff]
    %v282 = vld [vmem:[#allocation2 + $0xe4] sm:$0xff]
    %v283 = vld [vmem:[#allocation2 + $0xec] sm:$0xff]
    %v284 = vadd.f32 %v252, %v268
    %v285 = vadd.f32 %v253, %v269
    %v286 = vadd.f32 %v254, %v270
    %v287 = vadd.f32 %v255, %v271
    %v288 = vadd.f32 %v256, %v272
    %v289 = vadd.f32 %v257, %v273
    %v290 = vadd.f32 %v258, %v274
    %v291 = vadd.f32 %v259, %v275
    %v292 = vadd.f32 %v260, %v276
    %v293 = vadd.f32 %v261, %v277
    %v294 = vadd.f32 %v262, %v278
    %v295 = vadd.f32 %v263, %v279
    %v296 = vadd.f32 %v264, %v280
    %v297 = vadd.f32 %v265, %v281
    %v298 = vadd.f32 %v266, %v282
    %v299 = vadd.f32 %v267, %v283
    %v300 = vld [vmem:[#allocation2 + $0x5] sm:$0xff]
    %v301 = vld [vmem:[#allocation2 + $0xd] sm:$0xff]
    %v302 = vld [vmem:[#allocation2 + $0x25] sm:$0xff]
    %v303 = vld [vmem:[#allocation2 + $0x2d] sm:$0xff]
    %v304 = vld [vmem:[#allocation2 + $0x45] sm:$0xff]
    %v305 = vld [vmem:[#allocation2 + $0x4d] sm:$0xff]
    %v306 = vld [vmem:[#allocation2 + $0x65] sm:$0xff]
    %v307 = vld [vmem:[#allocation2 + $0x6d] sm:$0xff]
    %v308 = vld [vmem:[#allocation2 + $0x85] sm:$0xff]
    %v309 = vld [vmem:[#allocation2 + $0x8d] sm:$0xff]
    %v310 = vld [vmem:[#allocation2 + $0xa5] sm:$0xff]
    %v311 = vld [vmem:[#allocation2 + $0xad] sm:$0xff]
    %v312 = vld [vmem:[#allocation2 + $0xc5] sm:$0xff]
    %v313 = vld [vmem:[#allocation2 + $0xcd] sm:$0xff]
    %v314 = vld [vmem:[#allocation2 + $0xe5] sm:$0xff]
    %v315 = vld [vmem:[#allocation2 + $0xed] sm:$0xff]
    %v316 = vadd.f32 %v284, %v300
    %v317 = vadd.f32 %v285, %v301
    %v318 = vadd.f32 %v286, %v302
    %v319 = vadd.f32 %v287, %v303
    %v320 = vadd.f32 %v288, %v304
    %v321 = vadd.f32 %v289, %v305
    %v322 = vadd.f32 %v290, %v306
    %v323 = vadd.f32 %v291, %v307
    %v324 = vadd.f32 %v292, %v308
    %v325 = vadd.f32 %v293, %v309
    %v326 = vadd.f32 %v294, %v310
    %v327 = vadd.f32 %v295, %v311
    %v328 = vadd.f32 %v296, %v312
    %v329 = vadd.f32 %v297, %v313
    %v330 = vadd.f32 %v298, %v314
    %v331 = vadd.f32 %v299, %v315
    %v332 = vld [vmem:[#allocation2 + $0x6] sm:$0xff]
    %v333 = vld [vmem:[#allocation2 + $0xe] sm:$0xff]
    %v334 = vld [vmem:[#allocation2 + $0x26] sm:$0xff]
    %v335 = vld [vmem:[#allocation2 + $0x2e] sm:$0xff]
    %v336 = vld [vmem:[#allocation2 + $0x46] sm:$0xff]
    %v337 = vld [vmem:[#allocation2 + $0x4e] sm:$0xff]
    %v338 = vld [vmem:[#allocation2 + $0x66] sm:$0xff]
    %v339 = vld [vmem:[#allocation2 + $0x6e] sm:$0xff]
    %v340 = vld [vmem:[#allocation2 + $0x86] sm:$0xff]
    %v341 = vld [vmem:[#allocation2 + $0x8e] sm:$0xff]
    %v342 = vld [vmem:[#allocation2 + $0xa6] sm:$0xff]
    %v343 = vld [vmem:[#allocation2 + $0xae] sm:$0xff]
    %v344 = vld [vmem:[#allocation2 + $0xc6] sm:$0xff]
    %v345 = vld [vmem:[#allocation2 + $0xce] sm:$0xff]
    %v346 = vld [vmem:[#allocation2 + $0xe6] sm:$0xff]
    %v347 = vld [vmem:[#allocation2 + $0xee] sm:$0xff]
    %v348 = vadd.f32 %v316, %v332
    %v349 = vadd.f32 %v317, %v333
    %v350 = vadd.f32 %v318, %v334
    %v351 = vadd.f32 %v319, %v335
    %v352 = vadd.f32 %v320, %v336
    %v353 = vadd.f32 %v321, %v337
    %v354 = vadd.f32 %v322, %v338
    %v355 = vadd.f32 %v323, %v339
    %v356 = vadd.f32 %v324, %v340
    %v357 = vadd.f32 %v325, %v341
    %v358 = vadd.f32 %v326, %v342
    %v359 = vadd.f32 %v327, %v343
    %v360 = vadd.f32 %v328, %v344
    %v361 = vadd.f32 %v329, %v345
    %v362 = vadd.f32 %v330, %v346
    %v363 = vadd.f32 %v331, %v347
    %v364 = vld [vmem:[#allocation2 + $0x7] sm:$0xff]
    %v365 = vld [vmem:[#allocation2 + $0xf] sm:$0xff]
    %v366 = vld [vmem:[#allocation2 + $0x27] sm:$0xff]
    %v367 = vld [vmem:[#allocation2 + $0x2f] sm:$0xff]
    %v368 = vld [vmem:[#allocation2 + $0x47] sm:$0xff]
    %v369 = vld [vmem:[#allocation2 + $0x4f] sm:$0xff]
    %v370 = vld [vmem:[#allocation2 + $0x67] sm:$0xff]
    %v371 = vld [vmem:[#allocation2 + $0x6f] sm:$0xff]
    %v372 = vld [vmem:[#allocation2 + $0x87] sm:$0xff]
    %v373 = vld [vmem:[#allocation2 + $0x8f] sm:$0xff]
    %v374 = vld [vmem:[#allocation2 + $0xa7] sm:$0xff]
    %v375 = vld [vmem:[#allocation2 + $0xaf] sm:$0xff]
    %v376 = vld [vmem:[#allocation2 + $0xc7] sm:$0xff]
    %v377 = vld [vmem:[#allocation2 + $0xcf] sm:$0xff]
    %v378 = vld [vmem:[#allocation2 + $0xe7] sm:$0xff]
    %v379 = vld [vmem:[#allocation2 + $0xef] sm:$0xff]
    %v380 = vadd.f32 %v348, %v364
    %v381 = vadd.f32 %v349, %v365
    %v382 = vadd.f32 %v350, %v366
    %v383 = vadd.f32 %v351, %v367
    %v384 = vadd.f32 %v352, %v368
    %v385 = vadd.f32 %v353, %v369
    %v386 = vadd.f32 %v354, %v370
    %v387 = vadd.f32 %v355, %v371
    %v388 = vadd.f32 %v356, %v372
    %v389 = vadd.f32 %v357, %v373
    %v390 = vadd.f32 %v358, %v374
    %v391 = vadd.f32 %v359, %v375
    %v392 = vadd.f32 %v360, %v376
    %v393 = vadd.f32 %v361, %v377
    %v394 = vadd.f32 %v362, %v378
    %v395 = vadd.f32 %v363, %v379
    %v396 = vld [vmem:[#allocation2 + $0x10] sm:$0xff]
    %v397 = vld [vmem:[#allocation2 + $0x30] sm:$0xff]
    %v398 = vld [vmem:[#allocation2 + $0x50] sm:$0xff]
    %v399 = vld [vmem:[#allocation2 + $0x70] sm:$0xff]
    %v400 = vld [vmem:[#allocation2 + $0x90] sm:$0xff]
    %v401 = vld [vmem:[#allocation2 + $0xb0] sm:$0xff]
    %v402 = vld [vmem:[#allocation2 + $0xd0] sm:$0xff]
    %v403 = vld [vmem:[#allocation2 + $0xf0] sm:$0xff]
    %v404 = vadd.f32 %v380, %v157
    %v405 = vadd.f32 %v381, %v396
    %v406 = vadd.f32 %v382, %v159
    %v407 = vadd.f32 %v383, %v397
    %v408 = vadd.f32 %v384, %v161
    %v409 = vadd.f32 %v385, %v398
    %v410 = vadd.f32 %v386, %v163
    %v411 = vadd.f32 %v387, %v399
    %v412 = vadd.f32 %v388, %v165
    %v413 = vadd.f32 %v389, %v400
    %v414 = vadd.f32 %v390, %v167
    %v415 = vadd.f32 %v391, %v401
    %v416 = vadd.f32 %v392, %v169
    %v417 = vadd.f32 %v393, %v402
    %v418 = vadd.f32 %v394, %v171
    %v419 = vadd.f32 %v395, %v403
    %v420 = vld [vmem:[#allocation2 + $0x11] sm:$0xff]
    %v421 = vld [vmem:[#allocation2 + $0x31] sm:$0xff]
    %v422 = vld [vmem:[#allocation2 + $0x51] sm:$0xff]
    %v423 = vld [vmem:[#allocation2 + $0x71] sm:$0xff]
    %v424 = vld [vmem:[#allocation2 + $0x91] sm:$0xff]
    %v425 = vld [vmem:[#allocation2 + $0xb1] sm:$0xff]
    %v426 = vld [vmem:[#allocation2 + $0xd1] sm:$0xff]
    %v427 = vld [vmem:[#allocation2 + $0xf1] sm:$0xff]
    %v428 = vadd.f32 %v404, %v173
    %v429 = vadd.f32 %v405, %v420
    %v430 = vadd.f32 %v406, %v175
    %v431 = vadd.f32 %v407, %v421
    %v432 = vadd.f32 %v408, %v177
    %v433 = vadd.f32 %v409, %v422
    %v434 = vadd.f32 %v410, %v179
    %v435 = vadd.f32 %v411, %v423
    %v436 = vadd.f32 %v412, %v181
    %v437 = vadd.f32 %v413, %v424
    %v438 = vadd.f32 %v414, %v183
    %v439 = vadd.f32 %v415, %v425
    %v440 = vadd.f32 %v416, %v185
    %v441 = vadd.f32 %v417, %v426
    %v442 = vadd.f32 %v418, %v187
    %v443 = vadd.f32 %v419, %v427
    %v444 = vld [vmem:[#allocation2 + $0x12] sm:$0xff]
    %v445 = vld [vmem:[#allocation2 + $0x32] sm:$0xff]
    %v446 = vld [vmem:[#allocation2 + $0x52] sm:$0xff]
    %v447 = vld [vmem:[#allocation2 + $0x72] sm:$0xff]
    %v448 = vld [vmem:[#allocation2 + $0x92] sm:$0xff]
    %v449 = vld [vmem:[#allocation2 + $0xb2] sm:$0xff]
    %v450 = vld [vmem:[#allocation2 + $0xd2] sm:$0xff]
    %v451 = vld [vmem:[#allocation2 + $0xf2] sm:$0xff]
    %v452 = vadd.f32 %v428, %v205
    %v453 = vadd.f32 %v429, %v444
    %v454 = vadd.f32 %v430, %v207
    %v455 = vadd.f32 %v431, %v445
    %v456 = vadd.f32 %v432, %v209
    %v457 = vadd.f32 %v433, %v446
    %v458 = vadd.f32 %v434, %v211
    %v459 = vadd.f32 %v435, %v447
    %v460 = vadd.f32 %v436, %v213
    %v461 = vadd.f32 %v437, %v448
    %v462 = vadd.f32 %v438, %v215
    %v463 = vadd.f32 %v439, %v449
    %v464 = vadd.f32 %v440, %v217
    %v465 = vadd.f32 %v441, %v450
    %v466 = vadd.f32 %v442, %v219
    %v467 = vadd.f32 %v443, %v451
    %v468 = vld [vmem:[#allocation2 + $0x13] sm:$0xff]
    %v469 = vld [vmem:[#allocation2 + $0x33] sm:$0xff]
    %v470 = vld [vmem:[#allocation2 + $0x53] sm:$0xff]
    %v471 = vld [vmem:[#allocation2 + $0x73] sm:$0xff]
    %v472 = vld [vmem:[#allocation2 + $0x93] sm:$0xff]
    %v473 = vld [vmem:[#allocation2 + $0xb3] sm:$0xff]
    %v474 = vld [vmem:[#allocation2 + $0xd3] sm:$0xff]
    %v475 = vld [vmem:[#allocation2 + $0xf3] sm:$0xff]
    %v476 = vadd.f32 %v452, %v237
    %v477 = vadd.f32 %v453, %v468
    %v478 = vadd.f32 %v454, %v239
    %v479 = vadd.f32 %v455, %v469
    %v480 = vadd.f32 %v456, %v241
    %v481 = vadd.f32 %v457, %v470
    %v482 = vadd.f32 %v458, %v243
    %v483 = vadd.f32 %v459, %v471
    %v484 = vadd.f32 %v460, %v245
    %v485 = vadd.f32 %v461, %v472
    %v486 = vadd.f32 %v462, %v247
    %v487 = vadd.f32 %v463, %v473
    %v488 = vadd.f32 %v464, %v249
    %v489 = vadd.f32 %v465, %v474
    %v490 = vadd.f32 %v466, %v251
    %v491 = vadd.f32 %v467, %v475
    %v492 = vld [vmem:[#allocation2 + $0x14] sm:$0xff]
    %v493 = vld [vmem:[#allocation2 + $0x34] sm:$0xff]
    %v494 = vld [vmem:[#allocation2 + $0x54] sm:$0xff]
    %v495 = vld [vmem:[#allocation2 + $0x74] sm:$0xff]
    %v496 = vld [vmem:[#allocation2 + $0x94] sm:$0xff]
    %v497 = vld [vmem:[#allocation2 + $0xb4] sm:$0xff]
    %v498 = vld [vmem:[#allocation2 + $0xd4] sm:$0xff]
    %v499 = vld [vmem:[#allocation2 + $0xf4] sm:$0xff]
    %v500 = vadd.f32 %v476, %v269
    %v501 = vadd.f32 %v477, %v492
    %v502 = vadd.f32 %v478, %v271
    %v503 = vadd.f32 %v479, %v493
    %v504 = vadd.f32 %v480, %v273
    %v505 = vadd.f32 %v481, %v494
    %v506 = vadd.f32 %v482, %v275
    %v507 = vadd.f32 %v483, %v495
    %v508 = vadd.f32 %v484, %v277
    %v509 = vadd.f32 %v485, %v496
    %v510 = vadd.f32 %v486, %v279
    %v511 = vadd.f32 %v487, %v497
    %v512 = vadd.f32 %v488, %v281
    %v513 = vadd.f32 %v489, %v498
    %v514 = vadd.f32 %v490, %v283
    %v515 = vadd.f32 %v491, %v499
    %v516 = vmul.f32 %v500, 0.07692308
    %v517 = vmul.f32 %v501, 0.07692308
    %v518 = vmul.f32 %v502, 0.07692308
    %v519 = vmul.f32 %v503, 0.07692308
    %v520 = vmul.f32 %v504, 0.07692308
    %v521 = vmul.f32 %v505, 0.07692308
    %v522 = vmul.f32 %v506, 0.07692308
    %v523 = vmul.f32 %v507, 0.07692308
    %v524 = vmul.f32 %v508, 0.07692308
    %v525 = vmul.f32 %v509, 0.07692308
    %v526 = vmul.f32 %v510, 0.07692308
    %v527 = vmul.f32 %v511, 0.07692308
    %v528 = vmul.f32 %v512, 0.07692308
    %v529 = vmul.f32 %v513, 0.07692308
    %v530 = vmul.f32 %v514, 0.07692308
    %v531 = vmul.f32 %v515, 0.07692308
    %532 = vst.msk [vmem:[#allocation7] sm:$0xff] %vm42, %v516
    %533 = vst.msk [vmem:[#allocation7 + $0x8] sm:$0xff] %vm42, %v517
    %534 = vst.msk [vmem:[#allocation7 + $0x10] sm:$0xff] %vm42, %v518
    %535 = vst.msk [vmem:[#allocation7 + $0x18] sm:$0xff] %vm42, %v519
    %536 = vst.msk [vmem:[#allocation7 + $0x20] sm:$0xff] %vm42, %v520
    %537 = vst.msk [vmem:[#allocation7 + $0x28] sm:$0xff] %vm42, %v521
    %538 = vst.msk [vmem:[#allocation7 + $0x30] sm:$0xff] %vm42, %v522
    %539 = vst.msk [vmem:[#allocation7 + $0x38] sm:$0xff] %vm42, %v523
    %540 = vst.msk [vmem:[#allocation7 + $0x40] sm:$0xff] %vm42, %v524
    %541 = vst.msk [vmem:[#allocation7 + $0x48] sm:$0xff] %vm42, %v525
    %542 = vst.msk [vmem:[#allocation7 + $0x50] sm:$0xff] %vm42, %v526
    %543 = vst.msk [vmem:[#allocation7 + $0x58] sm:$0xff] %vm42, %v527
    %544 = vst.msk [vmem:[#allocation7 + $0x60] sm:$0xff] %vm42, %v528
    %545 = vst.msk [vmem:[#allocation7 + $0x68] sm:$0xff] %vm42, %v529
    %546 = vst.msk [vmem:[#allocation7 + $0x70] sm:$0xff] %vm42, %v530
    %547 = vst.msk [vmem:[#allocation7 + $0x78] sm:$0xff] %vm42, %v531
    %v548 = vld [vmem:[#allocation3] sm:$0xff]
    %v549 = vld [vmem:[#allocation3 + $0x8] sm:$0xff]
    %v550 = vld [vmem:[#allocation3 + $0x10] sm:$0xff]
    %v551 = vld [vmem:[#allocation3 + $0x18] sm:$0xff]
    %v552 = vld [vmem:[#allocation3 + $0x20] sm:$0xff]
    %v553 = vld [vmem:[#allocation3 + $0x28] sm:$0xff]
    %v554 = vld [vmem:[#allocation3 + $0x30] sm:$0xff]
    %v555 = vld [vmem:[#allocation3 + $0x38] sm:$0xff]
    %v556 = vld [vmem:[#allocation3 + $0x40] sm:$0xff]
    %v557 = vld [vmem:[#allocation3 + $0x48] sm:$0xff]
    %v558 = vld [vmem:[#allocation3 + $0x50] sm:$0xff]
    %v559 = vld [vmem:[#allocation3 + $0x58] sm:$0xff]
    %v560 = vld [vmem:[#allocation3 + $0x60] sm:$0xff]
    %v561 = vld [vmem:[#allocation3 + $0x68] sm:$0xff]
    %v562 = vld [vmem:[#allocation3 + $0x70] sm:$0xff]
    %v563 = vld [vmem:[#allocation3 + $0x78] sm:$0xff]
    %v564 = vsub.f32 %v548, %v516
    %v565 = vsub.f32 %v549, %v517
    %v566 = vsub.f32 %v550, %v518
    %v567 = vsub.f32 %v551, %v519
    %v568 = vsub.f32 %v552, %v520
    %v569 = vsub.f32 %v553, %v521
    %v570 = vsub.f32 %v554, %v522
    %v571 = vsub.f32 %v555, %v523
    %v572 = vsub.f32 %v556, %v524
    %v573 = vsub.f32 %v557, %v525
    %v574 = vsub.f32 %v558, %v526
    %v575 = vsub.f32 %v559, %v527
    %v576 = vsub.f32 %v560, %v528
    %v577 = vsub.f32 %v561, %v529
    %v578 = vsub.f32 %v562, %v530
    %v579 = vsub.f32 %v563, %v531
    %580 = vst.msk [vmem:[#allocation6] sm:$0xff] %vm42, %v564
    %581 = vst.msk [vmem:[#allocation6 + $0x8] sm:$0xff] %vm42, %v565
    %582 = vst.msk [vmem:[#allocation6 + $0x10] sm:$0xff] %vm42, %v566
    %583 = vst.msk [vmem:[#allocation6 + $0x18] sm:$0xff] %vm42, %v567
    %584 = vst.msk [vmem:[#allocation6 + $0x20] sm:$0xff] %vm42, %v568
    %585 = vst.msk [vmem:[#allocation6 + $0x28] sm:$0xff] %vm42, %v569
    %586 = vst.msk [vmem:[#allocation6 + $0x30] sm:$0xff] %vm42, %v570
    %587 = vst.msk [vmem:[#allocation6 + $0x38] sm:$0xff] %vm42, %v571
    %588 = vst.msk [vmem:[#allocation6 + $0x40] sm:$0xff] %vm42, %v572
    %589 = vst.msk [vmem:[#allocation6 + $0x48] sm:$0xff] %vm42, %v573
    %590 = vst.msk [vmem:[#allocation6 + $0x50] sm:$0xff] %vm42, %v574
    %591 = vst.msk [vmem:[#allocation6 + $0x58] sm:$0xff] %vm42, %v575
    %592 = vst.msk [vmem:[#allocation6 + $0x60] sm:$0xff] %vm42, %v576
    %593 = vst.msk [vmem:[#allocation6 + $0x68] sm:$0xff] %vm42, %v577
    %594 = vst.msk [vmem:[#allocation6 + $0x70] sm:$0xff] %vm42, %v578
    %595 = vst.msk [vmem:[#allocation6 + $0x78] sm:$0xff] %vm42, %v579
    // Predicated region
    $region10: #{tpu_custom_call.1} parent=1 // pred_check
      _
    $region11: #{tpu_custom_call.1} parent=1 // pred_check_branch
      %597 = sbr.rel (0) target = $region13
    $region12: #{tpu_custom_call.1} parent=1 // pred_region
      %s599 = ssub.s32 2048, 2048
      %600 = vsyncadd [#allocation5], %s599
      %s601 = sshll.u32 [#allocation6], 4
      %s602 = int_to_ptr.vmem [resolvable:$true] %s601
      %607 = dma.vmem_to_hbm [thread:$0]  %s602, 2048, %s1, [#allocation5], 128, 128, 8
    $region13: #{tpu_custom_call.1} parent=1 // pred_fallthru
      _
    // Predicated region
    $region14: #{tpu_custom_call.1} parent=1 // pred_check
      _
    $region15: #{tpu_custom_call.1} parent=1 // pred_check_branch
      %609 = sbr.rel (0) target = $region17
    $region16: #{tpu_custom_call.1} parent=1 // pred_region
      %s611 = ssub.s32 2048, 2048
      %612 = vsyncadd [#allocation8], %s611
      %s613 = sshll.u32 [#allocation7], 4
      %s614 = int_to_ptr.vmem [resolvable:$true] %s613
      %619 = dma.vmem_to_hbm [thread:$0]  %s614, 2048, %s2, [#allocation8], 128, 128, 8
    $region17: #{tpu_custom_call.1} parent=1 // pred_fallthru
      _
    // Predicated region
    $region18: #{tpu_custom_call.1} parent=1 // pred_check
      _
    $region19: #{tpu_custom_call.1} parent=1 // pred_check_branch
      %621 = sbr.rel (0) target = $region21
    $region20: #{tpu_custom_call.1} parent=1 // pred_region
      %622 = dma.done [#allocation5], 2048
    $region21: #{tpu_custom_call.1} parent=1 // pred_fallthru
      _
    // Predicated region
    $region22: #{tpu_custom_call.1} parent=1 // pred_check
      _
    $region23: #{tpu_custom_call.1} parent=1 // pred_check_branch
      %624 = sbr.rel (0) target = $region25
    $region24: #{tpu_custom_call.1} parent=1 // pred_region
      %625 = dma.done [#allocation8], 2048
    $region25: #{tpu_custom_call.1} parent=1 // pred_fallthru
      _
    %626 = vsyncpa [#allocation4], 1
    %627 = vsyncpa [#allocation5], 1
    %628 = vsyncpa [#allocation8], 1

</llo_original>
